<compile_context>
chip_gen: v6e
topology: v6e:2x2x1
jax: 0.10.0
libtpu: 0.0.40
codegen_flags: <defaults>
</compile_context>

<pallas_src>
import functools

import jax
import jax.numpy as jnp
import numpy as np
from jax import lax
from jax.experimental import pallas as pl
from jax.experimental.pallas import tpu as pltpu


# ----------------------------------------------------------------------------
# Small one-time hardware probes (run eagerly, cached as Python values).
# ----------------------------------------------------------------------------
def _vmem_capacity_bytes() -> int:
    try:
        return int(pltpu.get_tpu_info().vmem_capacity_bytes)
    except Exception:  # pragma: no cover - older jax / unknown topology
        return 64 * 1024 * 1024  # conservative: v7x per-TensorCore VMEM


@functools.lru_cache(maxsize=None)
def _roll_shifts_to_higher_lanes() -> bool:
    """True iff pltpu.roll(x, s, axis)[..., i] == x[..., i - s] (jnp.roll-like).

    Determined once with a tiny probe kernel so the max-pool boundary masks in
    the main kernel can be derived analytically from one lane iota (12 data
    rolls / step) instead of also rolling the row-index map (24 rolls / step).
    """
    def probe(x_ref, o_ref):
        o_ref[...] = pltpu.roll(x_ref[...], 1, axis=1)

    x = jnp.broadcast_to(jnp.arange(128, dtype=jnp.float32), (8, 128))
    out = pl.pallas_call(
        probe, out_shape=jax.ShapeDtypeStruct((8, 128), jnp.float32))(x)
    return bool(out[0, 0] == 127.0)


# ----------------------------------------------------------------------------
# Kernel
# ----------------------------------------------------------------------------
def _space_attention_kernel(x_ref, m_avg_ref, m_max_ref, bias_ref, o_ref, *,
                            H, W, radius, roll_forward):
    """One batch-group.

    x_ref     : (bt, Lp)  inputs, lane = h*W + w for lane < H*W        (VMEM)
    m_avg_ref : (Lp, Lp)  fused avg_pool -> {_x,_y} -> conv matrix     (VMEM)
    m_max_ref : (Lp, Lp)  fused {_x,_y} -> conv matrix (max channel)   (VMEM)
    bias_ref  : (1, Lp)   fused bias row (f32)                         (VMEM)
    o_ref     : (bt, Lp)  sigmoid attention map
    """
    f32 = jnp.float32
    Lp = x_ref.shape[-1]
    xin = x_ref[...]
    x = xin.astype(f32)

    # Boundary masks for the max pool come from ONE lane iota (VPU); only the
    # data goes through the XLU.
    lane = lax.broadcasted_iota(jnp.int32, (1, Lp), 1)
    col = lane % W
    row = lane // W

    def take(v, d):
        # take(v, d)[..., i] == v[..., (i + d) % Lp]
        s = (-d) % Lp if roll_forward else d % Lp
        return pltpu.roll(v, s, axis=1)

    # kxk MaxPool (stride 1, pad k//2, -inf padding), separable w-then-h.
    rowmax = x
    for d in range(1, radius + 1):          # w-direction taps, both signs
        if d >= W:
            break
        for dd in (d, -d):
            valid = (col < W - dd) if dd > 0 else (col >= -dd)
            rowmax = jnp.maximum(rowmax,
                                 jnp.where(valid, take(x, dd), -jnp.inf))
    mx = rowmax
    for k in range(1, radius + 1):          # h-direction taps, both signs
        if k >= H:
            break
        for kk in (k, -k):
            valid = (row < H - kk) if kk > 0 else (row >= -kk)
            mx = jnp.maximum(mx,
                             jnp.where(valid, take(rowmax, kk * W), -jnp.inf))

    # Fused linear chain (avg-pool + _x/_y convs + biases + 3x3 conv):
    # exactly two MXU matmuls, f32 accumulation.
    wdt = m_avg_ref.dtype
    logits = (jnp.dot(xin.astype(wdt), m_avg_ref[...],
                      preferred_element_type=f32)
              + jnp.dot(mx.astype(wdt), m_max_ref[...],
                        preferred_element_type=f32)
              + bias_ref[...])

    # sigmoid: exp on the EUP, approximate reciprocal also on the EUP.
    o_ref[...] = pl.reciprocal(1.0 + jnp.exp(-logits),
                               approx=True).astype(o_ref.dtype)


# ----------------------------------------------------------------------------
# Host-side weight plumbing
# ----------------------------------------------------------------------------
def _conv_matrix(k2d, H, W):
    """(H*W, H*W) matrix M with  (x_flat @ M) == 'same' cross-correlation of
    the (H, W) map x with k2d under zero padding (PyTorch Conv2d semantics).

    M[ph*W + pw, qh*W + qw] = k2d[ph - qh + kh//2, pw - qw + kw//2]  (0 if OOB)
    """
    kh, kw = k2d.shape
    dh = jnp.arange(H)[:, None] - jnp.arange(H)[None, :] + kh // 2      # (H,H)
    dw = jnp.arange(W)[:, None] - jnp.arange(W)[None, :] + kw // 2      # (W,W)
    vh = (dh >= 0) & (dh < kh)
    vw = (dw >= 0) & (dw < kw)
    kv = k2d[jnp.clip(dh, 0, kh - 1)[:, :, None, None],
             jnp.clip(dw, 0, kw - 1)[None, None, :, :]]                 # (H,H,W,W)
    m = jnp.where(vh[:, :, None, None] & vw[None, None, :, :], kv, 0.0)
    return m.transpose(0, 2, 1, 3).reshape(H * W, H * W).astype(jnp.float32)


def space_attention(x, wx, bx, wy, by, wc, bc, *, compute_dtype=jnp.float32):
    """x: (B, 1, H, W) NCHW. Returns the (B, 1, H, W) sigmoid attention map.

    compute_dtype: dtype of the fused matmul operands (f32 by default; bf16 is
    recommended on v6e/v7x when the downstream tolerates ~1e-3 error).
    """
    return _space_attention_impl(
        x, wx, bx, wy, by, wc, bc,
        roll_forward=_roll_shifts_to_higher_lanes(),
        compute_dtype=jnp.dtype(compute_dtype))


@functools.partial(jax.jit, static_argnames=("roll_forward", "compute_dtype"))
def _space_attention_impl(x, wx, bx, wy, by, wc, bc, *, roll_forward,
                          compute_dtype):
    B, C, H, W = x.shape
    assert C == 1, "SpaceAttention's convs require the pooled concat to have 2 channels"
    k = wx.shape[-1]              # pool / 1D-conv kernel size (module default 7)
    radius = k // 2
    L = H * W
    Lp = int(pl.cdiv(L, 128) * 128)      # lane-dense blocks for any (H, W)

    f32 = jnp.float32
    # Conv-as-matrix operands (weight-only, shared by every grid step).
    avg_m = _conv_matrix(jnp.full((k, k), 1.0 / (k * k), f32), H, W)
    cx_a = _conv_matrix(wx[0, 0].reshape(1, k).astype(f32), H, W)  # _x on avg
    cx_m = _conv_matrix(wx[0, 1].reshape(1, k).astype(f32), H, W)  # _x on max
    cy_a = _conv_matrix(wy[0, 0].reshape(k, 1).astype(f32), H, W)  # _y on avg
    cy_m = _conv_matrix(wy[0, 1].reshape(k, 1).astype(f32), H, W)  # _y on max
    c3_x = _conv_matrix(wc[0, 0].astype(f32), H, W)                # conv on cx
    c3_y = _conv_matrix(wc[0, 1].astype(f32), H, W)                # conv on cy

    # Fuse the whole linear chain:  logits = x @ M_avg + max(x) @ M_max + bias.
    m_avg = avg_m @ (cx_a @ c3_x + cy_a @ c3_y)                    # (L, L)
    m_max = cx_m @ c3_x + cy_m @ c3_y                              # (L, L)
    bias_row = (bx.reshape(()) * c3_x.sum(0)
                + by.reshape(()) * c3_y.sum(0)
                + bc.reshape(()))[None, :].astype(f32)             # (1, L)

    if Lp != L:                    # zero-pad to keep blocks lane-dense
        m_avg = jnp.pad(m_avg, ((0, Lp - L), (0, Lp - L)))
        m_max = jnp.pad(m_max, ((0, Lp - L), (0, Lp - L)))
        bias_row = jnp.pad(bias_row, ((0, 0), (0, Lp - L)))
    m_avg = m_avg.astype(compute_dtype)
    m_max = m_max.astype(compute_dtype)

    # Flatten (H, W) into the lane axis — a free reshape, no halo pad needed.
    xf = x.reshape(B, L)
    if Lp != L:
        xf = jnp.pad(xf, ((0, 0), (0, Lp - L)))

    # Rows (sublanes) per grid step.  Up to 256 rows feeds the 256-wide MXUs
    # of v6e/v7x; for B >= 16 keep at least two grid steps so the "parallel"
    # batch axis can be split across v7x's two TensorCores.  (On v5e the MXU
    # is 4x128x128, so >128 rows simply means two MXU passes — still fine.)
    bt = min(256, int(pl.cdiv(B, 8)) * 8)
    if B >= 16:
        bt = min(bt, max(8, int(pl.cdiv(B, 16)) * 8))
    bp = int(pl.cdiv(B, bt)) * bt
    if bp != B:
        xf = jnp.pad(xf, ((0, bp - B), (0, 0)))

    # Generation-aware VMEM gating (v7x has only 64 MiB per TensorCore).
    itemsize = jnp.dtype(compute_dtype).itemsize
    io_itemsize = max(itemsize, x.dtype.itemsize)
    vmem_needed = 2 * (2 * Lp * Lp * itemsize      # M_avg, M_max (double buf)
                       + Lp * 4                    # bias row
                       + 2 * bt * Lp * io_itemsize)  # x / out blocks
    vmem_cap = _vmem_capacity_bytes()
    # TODO(synk): switch to a spatially tiled separable variant for maps where
    # the fused (Lp, Lp) operands no longer fit VMEM.
    assert vmem_needed <= int(0.6 * vmem_cap), (
        "attention map too large for the fused matmul formulation")
    vmem_limit = int(min(0.8 * vmem_cap,
                         max(32 * 1024 * 1024, 2 * vmem_needed)))

    out = pl.pallas_call(
        functools.partial(_space_attention_kernel, H=H, W=W, radius=radius,
                          roll_forward=roll_forward),
        out_shape=jax.ShapeDtypeStruct((bp, Lp), x.dtype),
        grid=(bp // bt,),
        in_specs=[
            pl.BlockSpec((bt, Lp), lambda g: (g, 0)),
            pl.BlockSpec((Lp, Lp), lambda g: (0, 0)),   # grid-constant weights
            pl.BlockSpec((Lp, Lp), lambda g: (0, 0)),
            pl.BlockSpec((1, Lp), lambda g: (0, 0)),
        ],
        out_specs=pl.BlockSpec((bt, Lp), lambda g: (g, 0)),
        compiler_params=pltpu.CompilerParams(
            dimension_semantics=("parallel",),
            vmem_limit_bytes=vmem_limit),
    )(xf, m_avg, m_max, bias_row)
    return out[:B, :L].reshape(B, 1, H, W)


# ----------------------------------------------------------------------------
# Pure-JAX reference mirroring the PyTorch forward.
# ----------------------------------------------------------------------------
def _reference(x, wx, bx, wy, by, wc, bc):
    k = wx.shape[-1]
    p = k // 2
    pad = ((0, 0), (0, 0), (p, p), (p, p))
    avg = lax.reduce_window(x, 0.0, lax.add, (1, 1, k, k), (1, 1, 1, 1), pad) / (k * k)
    mx = lax.reduce_window(x, -jnp.inf, lax.max, (1, 1, k, k), (1, 1, 1, 1), pad)
    cat1 = jnp.concatenate([avg, mx], axis=1)

    def conv(inp, w, b, padding):
        o = lax.conv_general_dilated(inp, w, (1, 1), padding,
                                     dimension_numbers=("NCHW", "OIHW", "NCHW"))
        return o + b.reshape(1, -1, 1, 1)

    cx = conv(cat1, wx, bx, ((0, 0), (p, p)))
    cy = conv(cat1, wy, by, ((p, p), (0, 0)))
    cat2 = jnp.concatenate([cx, cy], axis=1)
    return jax.nn.sigmoid(conv(cat2, wc, bc, ((1, 1), (1, 1))))


if __name__ == "__main__":
    key = jax.random.PRNGKey(0)
    ks = jax.random.split(key, 7)
    # B=8 packs one full 8-sublane block per grid step; C must be 1 for this module.
    B, C, H, W = 8, 1, 16, 16

    x = jax.random.normal(ks[0], (B, C, H, W), jnp.float32)
    # deterministic synthetic parameters (the module's weight_init is external)
    wx = 0.2 * jax.random.normal(ks[1], (1, 2, 1, 7), jnp.float32)
    bx = 0.1 * jax.random.normal(ks[2], (1,), jnp.float32)
    wy = 0.2 * jax.random.normal(ks[3], (1, 2, 7, 1), jnp.float32)
    by = 0.1 * jax.random.normal(ks[4], (1,), jnp.float32)
    wc = 0.2 * jax.random.normal(ks[5], (1, 2, 3, 3), jnp.float32)
    bc = 0.1 * jax.random.normal(ks[6], (1,), jnp.float32)

    # Resolve the pltpu.roll convention once, outside any tracing.
    _roll_shifts_to_higher_lanes()

    out = jax.block_until_ready(space_attention(x, wx, bx, wy, by, wc, bc))
    ref = jax.block_until_ready(_reference(x, wx, bx, wy, by, wc, bc))

    assert out.shape == (B, 1, H, W), out.shape
    # tolerance covers the approx (EUP) reciprocal used in the sigmoid
    np.testing.assert_allclose(np.asarray(out), np.asarray(ref),
                               rtol=5e-3, atol=5e-3)
    print("KERNEL_OK")
</pallas_src>

<mosaic_0001>
module attributes {stable_mosaic.version = 11 : i64} {
  func.func @probe(%arg0: memref<8x128xf32, #tpu.memory_space<vmem>>, %arg1: memref<8x128xf32, #tpu.memory_space<vmem>>) attributes {dimension_semantics = [], scalar_prefetch = 0 : i64, scratch_operands = 0 : i64, tpu.core_type = #tpu.core_type<tc>} {
    %c0 = arith.constant 0 : index
    %c0_0 = arith.constant 0 : index
    %0 = vector.load %arg0[%c0, %c0_0] : memref<8x128xf32, #tpu.memory_space<vmem>>, vector<8x128xf32>
    %c1_i32 = arith.constant 1 : i32
    %1 = tpu.dynamic_rotate %0 by %c1_i32 dim 1 : vector<8x128xf32>, i32 -> vector<8x128xf32>
    %c0_1 = arith.constant 0 : index
    %c0_2 = arith.constant 0 : index
    %2 = vector.load %arg1[%c0_1, %c0_2] : memref<8x128xf32, #tpu.memory_space<vmem>>, vector<8x128xf32>
    tpu.vector_store %arg1[%c0_1, %c0_2], %1 {strides = array<i32>} : memref<8x128xf32, #tpu.memory_space<vmem>>, vector<8x128xf32>,
    return
  }
}

</mosaic_0001>

<llo_original>
// kernel: tpu_custom_call.1
$region0: #{tpu_custom_call.1}
  #allocation0 [shape = 'u32[]', space=smem, size = 0x4, offset = 0x4, fixed_abs, tag = 'smem constant byte address 0x4 - core index']
  #allocation1 [shape = 'u32[144,128]{1,0:T(1,128)}', space=vmem, size = 0x12000, scoped, tag = 'internal scratch']
  %s0 = inlined_call_operand.hbm [shape: f32[8,128], index: 0, kind: input, shape index: {}]
  %s1 = inlined_call_operand.hbm [shape: f32[8,128], index: 1, kind: output, shape index: {}]
  %s2 = sld [smem:[#allocation0]]
  $region18: #{tpu_custom_call.1} parent=0
    _
  %s4 = ssub.s32 1, %s2
  %s5 = scalar_select 0, %s4, %s2
  $region1: #{tpu_custom_call.1} parent=0
    #allocation2 [shape = 'u8[4096]{0}', space=vmem, size = 0x1000, scoped, tag = 'input window, operand 0, single buffered']
    #allocation3 [shape = 's32[1]{0}', space=sflag, size = 0x4, scoped, tag = 'scoped memory for tpu_custom_call.1']
    #allocation4 [shape = 's32[1]{0}', space=sflag, size = 0x4, scoped, tag = 'scoped memory for tpu_custom_call.1']
    #allocation5 [shape = 'u8[4096]{0}', space=vmem, size = 0x1000, scoped, tag = 'output window, operand 0, single buffered']
    %6 = vsyncpa [#allocation3], 0
    %7 = vsyncpa [#allocation4], 0
    // Predicated region
    $region2: #{tpu_custom_call.1} parent=1 // pred_check
      _
    $region3: #{tpu_custom_call.1} parent=1 // pred_check_branch
      %9 = sbr.rel (0) target = $region5
    $region4: #{tpu_custom_call.1} parent=1 // pred_region
      %s11 = ssub.s32 128, 128
      %12 = vsyncadd [#allocation3], %s11
      %s14 = sshll.u32 [#allocation2], 4
      %s15 = int_to_ptr.vmem [resolvable:$true] %s14
      %17 = dma.hbm_to_vmem [thread:$0]  %s0, 128, %s15, [#allocation3]
    $region5: #{tpu_custom_call.1} parent=1 // pred_fallthru
      _
    // Predicated region
    $region6: #{tpu_custom_call.1} parent=1 // pred_check
      _
    $region7: #{tpu_custom_call.1} parent=1 // pred_check_branch
      %19 = sbr.rel (0) target = $region9
    $region8: #{tpu_custom_call.1} parent=1 // pred_region
      %20 = dma.done [#allocation3], 128
    $region9: #{tpu_custom_call.1} parent=1 // pred_fallthru
      _
    %v21 = vld [vmem:[#allocation2] sm:$0xff]
    %22 = vrot.lane.b32.xlu0 %v21, 1
    %v23 = vpop.permute.xlu0 %22
    %24 = vst [vmem:[#allocation5] sm:$0xff] %v23
    // Predicated region
    $region10: #{tpu_custom_call.1} parent=1 // pred_check
      _
    $region11: #{tpu_custom_call.1} parent=1 // pred_check_branch
      %26 = sbr.rel (0) target = $region13
    $region12: #{tpu_custom_call.1} parent=1 // pred_region
      %s28 = ssub.s32 128, 128
      %29 = vsyncadd [#allocation4], %s28
      %s31 = sshll.u32 [#allocation5], 4
      %s32 = int_to_ptr.vmem [resolvable:$true] %s31
      %34 = dma.vmem_to_hbm [thread:$0]  %s32, 128, %s1, [#allocation4]
    $region13: #{tpu_custom_call.1} parent=1 // pred_fallthru
      _
    // Predicated region
    $region14: #{tpu_custom_call.1} parent=1 // pred_check
      _
    $region15: #{tpu_custom_call.1} parent=1 // pred_check_branch
      %36 = sbr.rel (0) target = $region17
    $region16: #{tpu_custom_call.1} parent=1 // pred_region
      %37 = dma.done [#allocation4], 128
    $region17: #{tpu_custom_call.1} parent=1 // pred_fallthru
      _
    %38 = vsyncpa [#allocation3], 1
    %39 = vsyncpa [#allocation4], 1

</llo_original>
